<compile_context>
chip_gen: v7x
topology: tpu7x:2x2x1
jax: 0.10.0
libtpu: 0.0.40
codegen_flags: <defaults>
</compile_context>

<pallas_src>
import numpy as np
import jax
import jax.numpy as jnp
from jax.experimental import pallas as pl
from jax.experimental.pallas import tpu as pltpu


# --------------------------------------------------------------------------
# Fused kernel: (stem+key-folded) cross-attention + L2-norm + text logits.
# Each grid step processes Bb batch elements (static unroll).
# --------------------------------------------------------------------------
def _fused_denseclip_kernel(x_ref, qk_ref, wvo_ref, txt_ref, bias_ref, o_ref):
    """
    x_ref   : (Bb, C, HW)   raw pixel tokens, channels on the sublane axis
    qk_ref  : (Q, C)        (query_embed @ wq @ wk^T @ w_vis^T) / sqrt(D)
    wvo_ref : (C, Dout)     w_vis @ wv @ wo
    txt_ref : (Dout, n_cls) exp(temperature_pos) * text_features^T
    bias_ref: (1,) in SMEM  bias_for_sigmoid
    o_ref   : (Bb, Q, n_cls) logits
    """
    qk = qk_ref[...]       # (Q, C)   batch-invariant, read once
    wvo = wvo_ref[...]     # (C, Dout)
    txt = txt_ref[...]     # (Dout, n_cls)
    bias = bias_ref[0]

    Bb, C, _ = x_ref.shape

    for b in range(Bb):                                   # static unroll over the batch block
        x = x_ref[b]                                      # (C, HW), f32

        # attention scores (Q, HW): K=C=3 would underfill the MXU, so do it as
        # C broadcast FMAs on the VPU (the MXU/EUP slots stay free for the rest).
        s = qk[:, 0:1] * x[0:1, :]
        for c in range(1, C):
            s = s + qk[:, c:c+1] * x[c:c+1, :]

        s = s - jnp.max(s, axis=-1, keepdims=True)
        p = jnp.exp(s)
        # approx reciprocal runs on the (otherwise idle) EUP; the uniform
        # per-row scale error cancels exactly under the L2 normalization below.
        p = p * pl.reciprocal(jnp.sum(p, axis=-1, keepdims=True), approx=True)

        # softmax-weighted sum over HW (dense K=HW on the MXU): (Q, C)
        pc = jax.lax.dot_general(p, x, dimension_numbers=(((1,), (1,)), ((), ())),
                                 preferred_element_type=jnp.float32)

        # output projection (K=C=3): again VPU broadcast FMAs instead of the MXU.
        qt = pc[:, 0:1] * wvo[0:1, :]
        for c in range(1, C):
            qt = qt + pc[:, c:c+1] * wvo[c:c+1, :]

        # L2-normalize query tokens, then scaled similarity to class text features.
        qn = qt * jax.lax.rsqrt(jnp.sum(qt * qt, axis=-1, keepdims=True))
        logits = jnp.dot(qn, txt, preferred_element_type=jnp.float32) + bias
        o_ref[b] = logits.astype(o_ref.dtype)             # TODO(synk): lane-sparse store (n_cls=8)


def _default_grid_steps(batch_size):
    """1 step on single-TC chips (v5e/v6e); 2 steps on v7x (2 TensorCores)."""
    try:
        kind = jax.devices()[0].device_kind.lower()
    except Exception:
        kind = ""
    n_tc = 2 if "v7" in kind else 1
    steps = max(1, min(batch_size, n_tc))
    while batch_size % steps:        # keep the batch blocking exact
        steps -= 1
    return steps


def denseclip_forward_fused(x_pix, qk_fold, wvo_fold, txt_scaled_t, bias_vec,
                            num_steps=None):
    """x_pix: (B, C, HW) -> logits (B, Q, n_cls)."""
    B, C, HW = x_pix.shape
    Q, _ = qk_fold.shape
    Dout, n_cls = txt_scaled_t.shape
    if num_steps is None:
        num_steps = _default_grid_steps(B)
    Bb = B // num_steps

    return pl.pallas_call(
        _fused_denseclip_kernel,
        out_shape=jax.ShapeDtypeStruct((B, Q, n_cls), jnp.float32),
        grid=(num_steps,),
        in_specs=[
            pl.BlockSpec((Bb, C, HW), lambda i: (i, 0, 0)),
            pl.BlockSpec((Q, C), lambda i: (0, 0)),
            pl.BlockSpec((C, Dout), lambda i: (0, 0)),
            pl.BlockSpec((Dout, n_cls), lambda i: (0, 0)),
            pl.BlockSpec(memory_space=pltpu.MemorySpace.SMEM),   # bias scalar
        ],
        out_specs=pl.BlockSpec((Bb, Q, n_cls), lambda i: (i, 0, 0)),
        compiler_params=pltpu.CompilerParams(
            dimension_semantics=("parallel",)),
    )(x_pix, qk_fold, wvo_fold, txt_scaled_t, bias_vec)


# --------------------------------------------------------------------------
# DenseCLIP forward (host-side constant folding + one fused Pallas kernel)
# --------------------------------------------------------------------------
class DenseCLIPPallas:
    def __init__(self, key, n_cls=8, num_queries_per_class=1,
                 img_channels=3, embed_dim=64, output_dim=64):
        self.n_cls = n_cls
        self.num_queries = int(round(num_queries_per_class * n_cls))
        self.embed_dim = embed_dim
        self.output_dim = output_dim

        keys = jax.random.split(key, 8)
        # synthetic visual stem projection (stand-in for ModifiedResNet)
        self.w_vis = 0.02 * jax.random.normal(keys[0], (img_channels, embed_dim), jnp.float32)
        # DETR part (one cross-attention layer stand-in)
        self.query_embed = 0.02 * jax.random.normal(keys[1], (self.num_queries, embed_dim), jnp.float32)
        self.wq = 0.02 * jax.random.normal(keys[2], (embed_dim, embed_dim), jnp.float32)
        self.wk = 0.02 * jax.random.normal(keys[3], (embed_dim, embed_dim), jnp.float32)
        self.wv = 0.02 * jax.random.normal(keys[4], (embed_dim, embed_dim), jnp.float32)
        self.wo = 0.02 * jax.random.normal(keys[5], (embed_dim, output_dim), jnp.float32)
        # PromptLearner (pos_only_fixed_prompt): fixed, L2-normalized class
        # text embeddings (synthetic stand-in for CLIP-encoded templates).
        tfe = jax.random.normal(keys[6], (n_cls, output_dim), jnp.float32)
        self.fixed_text_embeddings = tfe / jnp.linalg.norm(tfe, axis=-1, keepdims=True)
        # misc params, as in __init__: temperature_pos = 3, bias_for_sigmoid = -6
        self.temperature_pos = jnp.float32(3.0)
        self.bias_for_sigmoid = jnp.float32(-6.0)

        # ---- host-side constant folding (batch-invariant, done once) ----
        # query, query-proj, key-proj and visual stem folded into ONE (Q, C) tensor:
        #   s = (query_embed @ wq) @ ((x^T @ w_vis) @ wk)^T / sqrt(D) = qk_fold @ x
        self.qk_fold = (self.query_embed @ self.wq @ self.wk.T @ self.w_vis.T) \
            / jnp.sqrt(jnp.float32(embed_dim))                                # (Q, C)
        # stem + value + output projection folded
        self.wvo_fold = self.w_vis @ self.wv @ self.wo                        # (C, Dout)
        # exp(temperature_pos) folded into the (transposed) text features
        self.txt_scaled_t = jnp.exp(self.temperature_pos) * self.fixed_text_embeddings.T  # (Dout, n_cls)
        # bias on the scalar path (SMEM)
        self.bias_vec = jnp.full((1,), self.bias_for_sigmoid, jnp.float32)

    def forward(self, image):
        # image: NCHW (B, C, H, W).  Contiguous reshape only — no transposes.
        B, C, H, W = image.shape
        x_pix = image.reshape(B, C, H * W)                                    # (B, C, HW)
        return denseclip_forward_fused(x_pix, self.qk_fold, self.wvo_fold,
                                       self.txt_scaled_t, self.bias_vec)      # (B, Q, n_cls)

    # pure-JAX reference (unfolded path) for correctness checking
    def reference_forward(self, image):
        B, C, H, W = image.shape
        x = jnp.transpose(image, (0, 2, 3, 1)).reshape(B, H * W, C)
        tok = x @ self.w_vis
        q = self.query_embed @ self.wq
        k = jnp.einsum("bnd,de->bne", tok, self.wk)
        v = jnp.einsum("bnd,de->bne", tok, self.wv)
        s = jnp.einsum("qd,bnd->bqn", q, k) / jnp.sqrt(jnp.float32(q.shape[-1]))
        p = jax.nn.softmax(s, axis=-1)
        ctx = jnp.einsum("bqn,bnd->bqd", p, v)
        qt = jnp.einsum("bqd,de->bqe", ctx, self.wo)
        qt = qt / jnp.linalg.norm(qt, axis=-1, keepdims=True)
        logits = jnp.exp(self.temperature_pos) * jnp.einsum(
            "bqd,cd->bqc", qt, self.fixed_text_embeddings) + self.bias_for_sigmoid
        return logits


if __name__ == "__main__":
    key = jax.random.PRNGKey(0)
    k_model, k_img = jax.random.split(key)

    # small deterministic inputs: batch=2, channels=3, spatial=8x8 (NCHW)
    image = jax.random.normal(k_img, (2, 3, 8, 8), jnp.float32)

    model = DenseCLIPPallas(k_model, n_cls=8, num_queries_per_class=1,
                            img_channels=3, embed_dim=64, output_dim=64)

    logits = model.forward(image)
    logits = jax.block_until_ready(logits)

    ref = model.reference_forward(image)
    # atol covers the ~exp(3) logit scale; host-side weight folding only
    # reassociates f32 matmuls (rounding-level differences).
    np.testing.assert_allclose(np.asarray(logits), np.asarray(ref),
                               rtol=1e-4, atol=5e-4)

    print("KERNEL_OK")
</pallas_src>

<mosaic_0001>
module attributes {stable_mosaic.version = 11 : i64} {
  func.func @_fused_denseclip_kernel(%arg0: i32, %arg1: memref<2x3x64xf32, #tpu.memory_space<vmem>>, %arg2: memref<8x3xf32, #tpu.memory_space<vmem>>, %arg3: memref<3x64xf32, #tpu.memory_space<vmem>>, %arg4: memref<64x8xf32, #tpu.memory_space<vmem>>, %arg5: memref<1xf32, #tpu.memory_space<smem>>, %arg6: memref<2x8x8xf32, #tpu.memory_space<vmem>>) attributes {dimension_semantics = [#tpu.dimension_semantics<parallel>], iteration_bounds = array<i64: 1>, scalar_prefetch = 0 : i64, scratch_operands = 0 : i64, tpu.core_type = #tpu.core_type<tc>, window_params = [{transform_indices = @transform_0, window_bounds = array<i64: 2, 3, 64>}, {pipeline_mode = #tpu.pipeline_mode<synchronous>, transform_indices = @transform_1, window_bounds = array<i64: 8, 3>}, {pipeline_mode = #tpu.pipeline_mode<synchronous>, transform_indices = @transform_2, window_bounds = array<i64: 3, 64>}, {pipeline_mode = #tpu.pipeline_mode<synchronous>, transform_indices = @transform_3, window_bounds = array<i64: 64, 8>}, {transform_indices = @transform_4, window_bounds = array<i64: 1>}, {transform_indices = @transform_5, window_bounds = array<i64: 2, 8, 8>}]} {
    %c0 = arith.constant 0 : index
    %c0_0 = arith.constant 0 : index
    %0 = vector.load %arg2[%c0, %c0_0] : memref<8x3xf32, #tpu.memory_space<vmem>>, vector<8x3xf32>
    %c0_1 = arith.constant 0 : index
    %c0_2 = arith.constant 0 : index
    %1 = vector.load %arg3[%c0_1, %c0_2] : memref<3x64xf32, #tpu.memory_space<vmem>>, vector<3x64xf32>
    %c0_3 = arith.constant 0 : index
    %c0_4 = arith.constant 0 : index
    %2 = vector.load %arg4[%c0_3, %c0_4] : memref<64x8xf32, #tpu.memory_space<vmem>>, vector<64x8xf32>
    %c0_5 = arith.constant 0 : index
    %3 = memref.load %arg5[%c0_5] : memref<1xf32, #tpu.memory_space<smem>>
    %c0_6 = arith.constant 0 : index
    %c0_7 = arith.constant 0 : index
    %c0_8 = arith.constant 0 : index
    %4 = vector.load %arg1[%c0_6, %c0_7, %c0_8] : memref<2x3x64xf32, #tpu.memory_space<vmem>>, vector<1x3x64xf32>
    %5 = vector.shape_cast %4 : vector<1x3x64xf32> to vector<3x64xf32>
    %6 = vector.extract_strided_slice %0 {offsets = [0, 0], sizes = [8, 1], strides = [1, 1]} : vector<8x3xf32> to vector<8x1xf32>
    %7 = vector.extract_strided_slice %5 {offsets = [0, 0], sizes = [1, 64], strides = [1, 1]} : vector<3x64xf32> to vector<1x64xf32>
    %8 = vector.broadcast %6 : vector<8x1xf32> to vector<8x64xf32>
    %9 = vector.broadcast %7 : vector<1x64xf32> to vector<8x64xf32>
    %10 = arith.mulf %8, %9 : vector<8x64xf32>
    %11 = vector.extract_strided_slice %0 {offsets = [0, 1], sizes = [8, 1], strides = [1, 1]} : vector<8x3xf32> to vector<8x1xf32>
    %12 = vector.extract_strided_slice %5 {offsets = [1, 0], sizes = [1, 64], strides = [1, 1]} : vector<3x64xf32> to vector<1x64xf32>
    %13 = vector.broadcast %11 : vector<8x1xf32> to vector<8x64xf32>
    %14 = vector.broadcast %12 : vector<1x64xf32> to vector<8x64xf32>
    %15 = arith.mulf %13, %14 : vector<8x64xf32>
    %16 = arith.addf %10, %15 : vector<8x64xf32>
    %17 = vector.extract_strided_slice %0 {offsets = [0, 2], sizes = [8, 1], strides = [1, 1]} : vector<8x3xf32> to vector<8x1xf32>
    %18 = vector.extract_strided_slice %5 {offsets = [2, 0], sizes = [1, 64], strides = [1, 1]} : vector<3x64xf32> to vector<1x64xf32>
    %19 = vector.broadcast %17 : vector<8x1xf32> to vector<8x64xf32>
    %20 = vector.broadcast %18 : vector<1x64xf32> to vector<8x64xf32>
    %21 = arith.mulf %19, %20 : vector<8x64xf32>
    %22 = arith.addf %16, %21 : vector<8x64xf32>
    %cst = arith.constant dense<0xFF800000> : vector<8xf32>
    %23 = vector.multi_reduction <maximumf>, %22, %cst [1] : vector<8x64xf32> to vector<8xf32>
    %24 = vector.shape_cast %23 : vector<8xf32> to vector<8x1xf32>
    %25 = vector.broadcast %24 : vector<8x1xf32> to vector<8x64xf32>
    %26 = arith.subf %22, %25 : vector<8x64xf32>
    %27 = math.exp %26 : vector<8x64xf32>
    %cst_9 = arith.constant dense<0.000000e+00> : vector<8xf32>
    %28 = vector.multi_reduction <add>, %27, %cst_9 [1] : vector<8x64xf32> to vector<8xf32>
    %29 = vector.shape_cast %28 : vector<8xf32> to vector<8x1xf32>
    %30 = tpu.reciprocal %29 {approx = true} : vector<8x1xf32> -> vector<8x1xf32>
    %31 = vector.broadcast %30 : vector<8x1xf32> to vector<8x64xf32>
    %32 = arith.mulf %27, %31 : vector<8x64xf32>
    %cst_10 = arith.constant dense<0.000000e+00> : vector<8x3xf32>
    %33 = tpu.matmul %32, %5, %cst_10 {dimension_numbers = #tpu.dot_dimension_numbers<[1], [1], [0], [0], [0, 0, 1, 0], [], []>} : vector<8x64xf32>, vector<3x64xf32>, vector<8x3xf32> -> vector<8x3xf32>
    %34 = vector.extract_strided_slice %33 {offsets = [0, 0], sizes = [8, 1], strides = [1, 1]} : vector<8x3xf32> to vector<8x1xf32>
    %35 = vector.extract_strided_slice %1 {offsets = [0, 0], sizes = [1, 64], strides = [1, 1]} : vector<3x64xf32> to vector<1x64xf32>
    %36 = vector.broadcast %34 : vector<8x1xf32> to vector<8x64xf32>
    %37 = vector.broadcast %35 : vector<1x64xf32> to vector<8x64xf32>
    %38 = arith.mulf %36, %37 : vector<8x64xf32>
    %39 = vector.extract_strided_slice %33 {offsets = [0, 1], sizes = [8, 1], strides = [1, 1]} : vector<8x3xf32> to vector<8x1xf32>
    %40 = vector.extract_strided_slice %1 {offsets = [1, 0], sizes = [1, 64], strides = [1, 1]} : vector<3x64xf32> to vector<1x64xf32>
    %41 = vector.broadcast %39 : vector<8x1xf32> to vector<8x64xf32>
    %42 = vector.broadcast %40 : vector<1x64xf32> to vector<8x64xf32>
    %43 = arith.mulf %41, %42 : vector<8x64xf32>
    %44 = arith.addf %38, %43 : vector<8x64xf32>
    %45 = vector.extract_strided_slice %33 {offsets = [0, 2], sizes = [8, 1], strides = [1, 1]} : vector<8x3xf32> to vector<8x1xf32>
    %46 = vector.extract_strided_slice %1 {offsets = [2, 0], sizes = [1, 64], strides = [1, 1]} : vector<3x64xf32> to vector<1x64xf32>
    %47 = vector.broadcast %45 : vector<8x1xf32> to vector<8x64xf32>
    %48 = vector.broadcast %46 : vector<1x64xf32> to vector<8x64xf32>
    %49 = arith.mulf %47, %48 : vector<8x64xf32>
    %50 = arith.addf %44, %49 : vector<8x64xf32>
    %51 = arith.mulf %50, %50 : vector<8x64xf32>
    %cst_11 = arith.constant dense<0.000000e+00> : vector<8xf32>
    %52 = vector.multi_reduction <add>, %51, %cst_11 [1] : vector<8x64xf32> to vector<8xf32>
    %53 = vector.shape_cast %52 : vector<8xf32> to vector<8x1xf32>
    %54 = math.rsqrt %53 : vector<8x1xf32>
    %55 = vector.broadcast %54 : vector<8x1xf32> to vector<8x64xf32>
    %56 = arith.mulf %50, %55 : vector<8x64xf32>
    %cst_12 = arith.constant dense<0.000000e+00> : vector<8x8xf32>
    %57 = tpu.matmul %56, %2, %cst_12 {dimension_numbers = #tpu.dot_dimension_numbers<[1], [0], [0], [1], [0, 0, 1, 1], [], []>} : vector<8x64xf32>, vector<64x8xf32>, vector<8x8xf32> -> vector<8x8xf32>
    %58 = vector.broadcast %3 : f32 to vector<8x8xf32>
    %59 = arith.addf %57, %58 : vector<8x8xf32>
    %c0_13 = arith.constant 0 : index
    %c0_14 = arith.constant 0 : index
    %c0_15 = arith.constant 0 : index
    %60 = vector.load %arg6[%c0_13, %c0_14, %c0_15] : memref<2x8x8xf32, #tpu.memory_space<vmem>>, vector<1x8x8xf32>
    %61 = vector.shape_cast %60 : vector<1x8x8xf32> to vector<8x8xf32>
    %62 = vector.shape_cast %59 : vector<8x8xf32> to vector<1x8x8xf32>
    tpu.vector_store %arg6[%c0_13, %c0_14, %c0_15], %62 {strides = array<i32>} : memref<2x8x8xf32, #tpu.memory_space<vmem>>, vector<1x8x8xf32>,
    %c1 = arith.constant 1 : index
    %c0_16 = arith.constant 0 : index
    %c0_17 = arith.constant 0 : index
    %63 = vector.load %arg1[%c1, %c0_16, %c0_17] : memref<2x3x64xf32, #tpu.memory_space<vmem>>, vector<1x3x64xf32>
    %64 = vector.shape_cast %63 : vector<1x3x64xf32> to vector<3x64xf32>
    %65 = vector.extract_strided_slice %0 {offsets = [0, 0], sizes = [8, 1], strides = [1, 1]} : vector<8x3xf32> to vector<8x1xf32>
    %66 = vector.extract_strided_slice %64 {offsets = [0, 0], sizes = [1, 64], strides = [1, 1]} : vector<3x64xf32> to vector<1x64xf32>
    %67 = vector.broadcast %65 : vector<8x1xf32> to vector<8x64xf32>
    %68 = vector.broadcast %66 : vector<1x64xf32> to vector<8x64xf32>
    %69 = arith.mulf %67, %68 : vector<8x64xf32>
    %70 = vector.extract_strided_slice %0 {offsets = [0, 1], sizes = [8, 1], strides = [1, 1]} : vector<8x3xf32> to vector<8x1xf32>
    %71 = vector.extract_strided_slice %64 {offsets = [1, 0], sizes = [1, 64], strides = [1, 1]} : vector<3x64xf32> to vector<1x64xf32>
    %72 = vector.broadcast %70 : vector<8x1xf32> to vector<8x64xf32>
    %73 = vector.broadcast %71 : vector<1x64xf32> to vector<8x64xf32>
    %74 = arith.mulf %72, %73 : vector<8x64xf32>
    %75 = arith.addf %69, %74 : vector<8x64xf32>
    %76 = vector.extract_strided_slice %0 {offsets = [0, 2], sizes = [8, 1], strides = [1, 1]} : vector<8x3xf32> to vector<8x1xf32>
    %77 = vector.extract_strided_slice %64 {offsets = [2, 0], sizes = [1, 64], strides = [1, 1]} : vector<3x64xf32> to vector<1x64xf32>
    %78 = vector.broadcast %76 : vector<8x1xf32> to vector<8x64xf32>
    %79 = vector.broadcast %77 : vector<1x64xf32> to vector<8x64xf32>
    %80 = arith.mulf %78, %79 : vector<8x64xf32>
    %81 = arith.addf %75, %80 : vector<8x64xf32>
    %cst_18 = arith.constant dense<0xFF800000> : vector<8xf32>
    %82 = vector.multi_reduction <maximumf>, %81, %cst_18 [1] : vector<8x64xf32> to vector<8xf32>
    %83 = vector.shape_cast %82 : vector<8xf32> to vector<8x1xf32>
    %84 = vector.broadcast %83 : vector<8x1xf32> to vector<8x64xf32>
    %85 = arith.subf %81, %84 : vector<8x64xf32>
    %86 = math.exp %85 : vector<8x64xf32>
    %cst_19 = arith.constant dense<0.000000e+00> : vector<8xf32>
    %87 = vector.multi_reduction <add>, %86, %cst_19 [1] : vector<8x64xf32> to vector<8xf32>
    %88 = vector.shape_cast %87 : vector<8xf32> to vector<8x1xf32>
    %89 = tpu.reciprocal %88 {approx = true} : vector<8x1xf32> -> vector<8x1xf32>
    %90 = vector.broadcast %89 : vector<8x1xf32> to vector<8x64xf32>
    %91 = arith.mulf %86, %90 : vector<8x64xf32>
    %cst_20 = arith.constant dense<0.000000e+00> : vector<8x3xf32>
    %92 = tpu.matmul %91, %64, %cst_20 {dimension_numbers = #tpu.dot_dimension_numbers<[1], [1], [0], [0], [0, 0, 1, 0], [], []>} : vector<8x64xf32>, vector<3x64xf32>, vector<8x3xf32> -> vector<8x3xf32>
    %93 = vector.extract_strided_slice %92 {offsets = [0, 0], sizes = [8, 1], strides = [1, 1]} : vector<8x3xf32> to vector<8x1xf32>
    %94 = vector.extract_strided_slice %1 {offsets = [0, 0], sizes = [1, 64], strides = [1, 1]} : vector<3x64xf32> to vector<1x64xf32>
    %95 = vector.broadcast %93 : vector<8x1xf32> to vector<8x64xf32>
    %96 = vector.broadcast %94 : vector<1x64xf32> to vector<8x64xf32>
    %97 = arith.mulf %95, %96 : vector<8x64xf32>
    %98 = vector.extract_strided_slice %92 {offsets = [0, 1], sizes = [8, 1], strides = [1, 1]} : vector<8x3xf32> to vector<8x1xf32>
    %99 = vector.extract_strided_slice %1 {offsets = [1, 0], sizes = [1, 64], strides = [1, 1]} : vector<3x64xf32> to vector<1x64xf32>
    %100 = vector.broadcast %98 : vector<8x1xf32> to vector<8x64xf32>
    %101 = vector.broadcast %99 : vector<1x64xf32> to vector<8x64xf32>
    %102 = arith.mulf %100, %101 : vector<8x64xf32>
    %103 = arith.addf %97, %102 : vector<8x64xf32>
    %104 = vector.extract_strided_slice %92 {offsets = [0, 2], sizes = [8, 1], strides = [1, 1]} : vector<8x3xf32> to vector<8x1xf32>
    %105 = vector.extract_strided_slice %1 {offsets = [2, 0], sizes = [1, 64], strides = [1, 1]} : vector<3x64xf32> to vector<1x64xf32>
    %106 = vector.broadcast %104 : vector<8x1xf32> to vector<8x64xf32>
    %107 = vector.broadcast %105 : vector<1x64xf32> to vector<8x64xf32>
    %108 = arith.mulf %106, %107 : vector<8x64xf32>
    %109 = arith.addf %103, %108 : vector<8x64xf32>
    %110 = arith.mulf %109, %109 : vector<8x64xf32>
    %cst_21 = arith.constant dense<0.000000e+00> : vector<8xf32>
    %111 = vector.multi_reduction <add>, %110, %cst_21 [1] : vector<8x64xf32> to vector<8xf32>
    %112 = vector.shape_cast %111 : vector<8xf32> to vector<8x1xf32>
    %113 = math.rsqrt %112 : vector<8x1xf32>
    %114 = vector.broadcast %113 : vector<8x1xf32> to vector<8x64xf32>
    %115 = arith.mulf %109, %114 : vector<8x64xf32>
    %cst_22 = arith.constant dense<0.000000e+00> : vector<8x8xf32>
    %116 = tpu.matmul %115, %2, %cst_22 {dimension_numbers = #tpu.dot_dimension_numbers<[1], [0], [0], [1], [0, 0, 1, 1], [], []>} : vector<8x64xf32>, vector<64x8xf32>, vector<8x8xf32> -> vector<8x8xf32>
    %117 = vector.broadcast %3 : f32 to vector<8x8xf32>
    %118 = arith.addf %116, %117 : vector<8x8xf32>
    %c1_23 = arith.constant 1 : index
    %c0_24 = arith.constant 0 : index
    %c0_25 = arith.constant 0 : index
    %119 = vector.load %arg6[%c1_23, %c0_24, %c0_25] : memref<2x8x8xf32, #tpu.memory_space<vmem>>, vector<1x8x8xf32>
    %120 = vector.shape_cast %119 : vector<1x8x8xf32> to vector<8x8xf32>
    %121 = vector.shape_cast %118 : vector<8x8xf32> to vector<1x8x8xf32>
    tpu.vector_store %arg6[%c1_23, %c0_24, %c0_25], %121 {strides = array<i32>} : memref<2x8x8xf32, #tpu.memory_space<vmem>>, vector<1x8x8xf32>,
    return
  }
  func.func @transform_0(%arg0: i32) -> (i32, i32, i32) {
    %c0_i32 = arith.constant 0 : i32
    %c0_i32_0 = arith.constant 0 : i32
    %c0_i32_1 = arith.constant 0 : i32
    return %arg0, %c0_i32, %c0_i32_0 : i32, i32, i32
  }
  func.func @transform_1(%arg0: i32) -> (i32, i32) {
    %c0_i32 = arith.constant 0 : i32
    %c0_i32_0 = arith.constant 0 : i32
    %c0_i32_1 = arith.constant 0 : i32
    return %c0_i32, %c0_i32_0 : i32, i32
  }
  func.func @transform_2(%arg0: i32) -> (i32, i32) {
    %c0_i32 = arith.constant 0 : i32
    %c0_i32_0 = arith.constant 0 : i32
    %c0_i32_1 = arith.constant 0 : i32
    return %c0_i32, %c0_i32_0 : i32, i32
  }
  func.func @transform_3(%arg0: i32) -> (i32, i32) {
    %c0_i32 = arith.constant 0 : i32
    %c0_i32_0 = arith.constant 0 : i32
    %c0_i32_1 = arith.constant 0 : i32
    return %c0_i32, %c0_i32_0 : i32, i32
  }
  func.func @transform_4(%arg0: i32) -> i32 {
    %c0_i32 = arith.constant 0 : i32
    %c0_i32_0 = arith.constant 0 : i32
    return %c0_i32 : i32
  }
  func.func @transform_5(%arg0: i32) -> (i32, i32, i32) {
    %c0_i32 = arith.constant 0 : i32
    %c0_i32_0 = arith.constant 0 : i32
    %c0_i32_1 = arith.constant 0 : i32
    return %arg0, %c0_i32, %c0_i32_0 : i32, i32, i32
  }
}

</mosaic_0001>

<llo_original>
// kernel: tpu_custom_call.1
$region0: #{tpu_custom_call.1}
  #allocation0 [shape = 'u32[]', space=smem, size = 0x4, offset = 0x4, fixed_abs, tag = 'smem constant byte address 0x4 - core index']
  #allocation1 [shape = 'u32[144,128]{1,0:T(1,128)}', space=vmem, size = 0x12000, scoped, tag = 'internal scratch']
  #allocation2 [shape = 'f32[1]{0:T(128)S(6)}', space=smem, size = 0x200, scoped, tag = 'scoped memory for tpu_custom_call.1']
  %s0 = inlined_call_operand.vmem [shape: f32[2,3,64], index: 0, kind: input, shape index: {}]
  %s1 = inlined_call_operand.vmem [shape: f32[8,3], index: 1, kind: input, shape index: {}]
  %s2 = inlined_call_operand.vmem [shape: f32[3,64], index: 2, kind: input, shape index: {}]
  %s3 = inlined_call_operand.vmem [shape: f32[64,8], index: 3, kind: input, shape index: {}]
  %s4 = inlined_call_operand.<no memory space> [shape: f32[1], index: 4, kind: input, shape index: {}]
  %s5 = inlined_call_operand.hbm [shape: f32[2,8,8], index: 5, kind: output, shape index: {}]
  %s6 = sld [smem:[#allocation0]]
  $region30: #{tpu_custom_call.1} parent=0
    _
  %s8 = ssub.s32 1, %s6
  %s9 = scalar_select 0, %s8, %s6
  %10 = sst [smem:[#allocation2]] %s4
  $region1: #{tpu_custom_call.1} parent=0
    #allocation3 [shape = 'u8[8192]{0}', space=vmem, size = 0x2000, scoped, tag = 'output window, operand 0, single buffered']
    #allocation4 [shape = 's32[1]{0}', space=sflag, size = 0x4, scoped, tag = 'scoped memory for tpu_custom_call.1']
    %11 = vsyncpa [#allocation4], 0
    // Predicated region
    $region2: #{tpu_custom_call.1} parent=1 // pred_check
      _
    $region3: #{tpu_custom_call.1} parent=1 // pred_check_branch
      %13 = sbr.rel (0) target = $region5
    $region4: #{tpu_custom_call.1} parent=1 // pred_region
      _
    $region5: #{tpu_custom_call.1} parent=1 // pred_fallthru
      _
    // Predicated region
    $region6: #{tpu_custom_call.1} parent=1 // pred_check
      _
    $region7: #{tpu_custom_call.1} parent=1 // pred_check_branch
      %15 = sbr.rel (0) target = $region9
    $region8: #{tpu_custom_call.1} parent=1 // pred_region
      _
    $region9: #{tpu_custom_call.1} parent=1 // pred_fallthru
      _
    // Predicated region
    $region10: #{tpu_custom_call.1} parent=1 // pred_check
      _
    $region11: #{tpu_custom_call.1} parent=1 // pred_check_branch
      %17 = sbr.rel (0) target = $region13
    $region12: #{tpu_custom_call.1} parent=1 // pred_region
      _
    $region13: #{tpu_custom_call.1} parent=1 // pred_fallthru
      _
    // Predicated region
    $region14: #{tpu_custom_call.1} parent=1 // pred_check
      _
    $region15: #{tpu_custom_call.1} parent=1 // pred_check_branch
      %19 = sbr.rel (0) target = $region17
    $region16: #{tpu_custom_call.1} parent=1 // pred_region
      _
    $region17: #{tpu_custom_call.1} parent=1 // pred_fallthru
      _
    // Predicated region
    $region18: #{tpu_custom_call.1} parent=1 // pred_check
      _
    $region19: #{tpu_custom_call.1} parent=1 // pred_check_branch
      %21 = sbr.rel (0) target = $region21
    $region20: #{tpu_custom_call.1} parent=1 // pred_region
      _
    $region21: #{tpu_custom_call.1} parent=1 // pred_fallthru
      _
    %v22 = vld [vmem:[%s1] sm:$0xff]
    %v23 = vld [vmem:[%s2] sm:$0x7]
    %v24 = vld [vmem:[%s3] sm:$0xff]
    %v25 = vld [vmem:[%s3 + $0x8] sm:$0xff]
    %v26 = vld [vmem:[%s3 + $0x10] sm:$0xff]
    %v27 = vld [vmem:[%s3 + $0x18] sm:$0xff]
    %v28 = vld [vmem:[%s3 + $0x20] sm:$0xff]
    %v29 = vld [vmem:[%s3 + $0x28] sm:$0xff]
    %v30 = vld [vmem:[%s3 + $0x30] sm:$0xff]
    %v31 = vld [vmem:[%s3 + $0x38] sm:$0xff]
    %s32 = sld [smem:[#allocation2]]
    %v33 = vld [vmem:[%s0] sm:$0x7]
    %35 = vset.pattern.permute.xlu0 0
    %36 = vperm.xlu0 %35, %v22
    %v37 = vpop.permute.xlu0 %36
    %v39 = vlaneseq
    %v40 = vshrl.u32 %v39, 7
    %v41 = vsub.s32 0, %v40
    %v42 = vrot.slane %v33, %v41
    %v43 = vmul.f32 %v37, %v42
    %44 = vset.pattern.permute.xlu0 1
    %45 = vperm.xlu0 %44, %v22
    %v46 = vpop.permute.xlu0 %45
    %v48 = vlaneseq
    %v49 = vshrl.u32 %v48, 7
    %v50 = vsub.s32 1, %v49
    %v51 = vrot.slane %v33, %v50
    %v52 = vmul.f32 %v46, %v51
    %v53 = vadd.f32 %v43, %v52
    %54 = vset.pattern.permute.xlu0 2
    %55 = vperm.xlu0 %54, %v22
    %v56 = vpop.permute.xlu0 %55
    %v58 = vlaneseq
    %v59 = vshrl.u32 %v58, 7
    %v60 = vsub.s32 2, %v59
    %v61 = vrot.slane %v33, %v60
    %v62 = vmul.f32 %v56, %v61
    %v63 = vadd.f32 %v53, %v62
    %vm64 = vcmask 523264
    %v65 = vsel %vm64, %v63, -inf
    %66 = vmax.xlane.f32.xlu0 %v65
    %v67 = vpop.xlane.xlu0 %66
    %v68 = vsub.f32 %v63, %v67
    %v69 = vmul.f32 %v68, 1.442695
    %v70 = vpow.pop %v69
    %v71 = vsel %vm64, %v70, 0.0
    %72 = vadd.xlane.f32.xlu0 %v71
    %v73 = vpop.xlane.xlu0 %72
    %v74 = vrcp.pop %v73
    %v75 = vmul.f32 %v70, %v74
    %v77 = vsel %vm64, %v75, 0
    %v80 = vsel %vm64, %v33, 0
    %82 = vmatprep.subr.mxu0 0.0
    %83 = vmatpush1.xpose.msra.mxu0 %v80
    %84 = vmatprep.subr.mxu0 0.0
    %85 = vmatpush1.xpose.msra.mxu0 0.0
    %86 = vmatprep.subr.mxu0 0.0
    %87 = vmatpush1.xpose.msra.mxu0 0.0
    %88 = vmatprep.subr.mxu0 0.0
    %89 = vmatpush1.xpose.msra.mxu0 0.0
    %90 = vmatprep.subr.mxu0 0.0
    %91 = vmatpush1.xpose.msra.mxu0 0.0
    %92 = vmatprep.subr.mxu0 0.0
    %93 = vmatpush1.xpose.msra.mxu0 0.0
    %94 = vmatprep.subr.mxu0 0.0
    %95 = vmatpush1.xpose.msra.mxu0 0.0
    %96 = vmatprep.subr.mxu0 0.0
    %97 = vmatpush1.xpose.msra.mxu0 0.0
    %98 = vmatprep.subr.mxu0 0.0
    %99 = vmatpush1.xpose.msra.mxu0 0.0
    %100 = vmatprep.subr.mxu0 0.0
    %101 = vmatpush1.xpose.msra.mxu0 0.0
    %102 = vmatprep.subr.mxu0 0.0
    %103 = vmatpush1.xpose.msra.mxu0 0.0
    %104 = vmatprep.subr.mxu0 0.0
    %105 = vmatpush1.xpose.msra.mxu0 0.0
    %106 = vmatprep.subr.mxu0 0.0
    %107 = vmatpush1.xpose.msra.mxu0 0.0
    %108 = vmatprep.subr.mxu0 0.0
    %109 = vmatpush1.xpose.msra.mxu0 0.0
    %110 = vmatprep.subr.mxu0 0.0
    %111 = vmatpush1.xpose.msra.mxu0 0.0
    %112 = vmatprep.subr.mxu0 0.0
    %113 = vmatpush1.xpose.msra.mxu0 0.0
    %114 = vmatprep.subr.mxu0 0.0
    %115 = vmatpush1.xpose.msra.mxu0 0.0
    %116 = vmatprep.subr.mxu0 0.0
    %117 = vmatpush1.xpose.msra.mxu0 0.0
    %118 = vmatprep.subr.mxu0 0.0
    %119 = vmatpush1.xpose.msra.mxu0 0.0
    %120 = vmatprep.subr.mxu0 0.0
    %121 = vmatpush1.xpose.msra.mxu0 0.0
    %122 = vmatprep.subr.mxu0 0.0
    %123 = vmatpush1.xpose.msra.mxu0 0.0
    %124 = vmatprep.subr.mxu0 0.0
    %125 = vmatpush1.xpose.msra.mxu0 0.0
    %126 = vmatprep.subr.mxu0 0.0
    %127 = vmatpush1.xpose.msra.mxu0 0.0
    %128 = vmatprep.subr.mxu0 0.0
    %129 = vmatpush1.xpose.msra.mxu0 0.0
    %130 = vmatprep.subr.mxu0 0.0
    %131 = vmatpush1.xpose.msra.mxu0 0.0
    %132 = vmatprep.subr.mxu0 0.0
    %133 = vmatpush1.xpose.msra.mxu0 0.0
    %134 = vmatprep.subr.mxu0 0.0
    %135 = vmatpush1.xpose.msra.mxu0 0.0
    %136 = vmatprep.subr.mxu0 0.0
    %137 = vmatpush1.xpose.msra.mxu0 0.0
    %138 = vmatprep.subr.mxu0 0.0
    %139 = vmatpush1.xpose.msra.mxu0 0.0
    %140 = vmatprep.subr.mxu0 0.0
    %141 = vmatpush1.xpose.msra.mxu0 0.0
    %142 = vmatprep.subr.mxu0 0.0
    %143 = vmatpush1.xpose.msra.mxu0 0.0
    %144 = vmatprep.subr.mxu0 0.0
    %145 = vmatpush1.xpose.msra.mxu0 0.0
    %146 = vmatprep.mubr.f32.mxu0 0.0
    %147 = vmatmul.mubr.f32.gmra.mrb[0].mxu0 %v77
    %v148 = vpop.f32.mrb[0].mxu0
    %v149 = vadd.f32 0.0, %v148
    %v150 = vpop.f32.mrb[0].mxu0
    %151 = vdwg.mxu0
    %153 = vset.pattern.permute.xlu0 0
    %154 = vperm.xlu0 %153, %v149
    %v155 = vpop.permute.xlu0 %154
    %v157 = vlaneseq
    %v158 = vshrl.u32 %v157, 7
    %v159 = vsub.s32 0, %v158
    %v160 = vrot.slane %v23, %v159
    %v161 = vmul.f32 %v155, %v160
    %162 = vset.pattern.permute.xlu0 1
    %163 = vperm.xlu0 %162, %v149
    %v164 = vpop.permute.xlu0 %163
    %v166 = vlaneseq
    %v167 = vshrl.u32 %v166, 7
    %v168 = vsub.s32 1, %v167
    %v169 = vrot.slane %v23, %v168
    %v170 = vmul.f32 %v164, %v169
    %v171 = vadd.f32 %v161, %v170
    %172 = vset.pattern.permute.xlu0 2
    %173 = vperm.xlu0 %172, %v149
    %v174 = vpop.permute.xlu0 %173
    %v176 = vlaneseq
    %v177 = vshrl.u32 %v176, 7
    %v178 = vsub.s32 2, %v177
    %v179 = vrot.slane %v23, %v178
    %v180 = vmul.f32 %v174, %v179
    %v181 = vadd.f32 %v171, %v180
    %v182 = vmul.f32 %v181, %v181
    %v183 = vsel %vm64, %v182, 0.0
    %184 = vadd.xlane.f32.xlu0 %v183
    %v185 = vpop.xlane.xlu0 %184
    %v186 = vrsqrt.pop %v185
    %v187 = vmul.f32 %v181, %v186
    %v188 = vstv %s32
    %v190 = vsel %vm64, %v187, 0
    %192 = vmatprep.subr.mxu0 0.0
    %193 = vmatpush1.msra.mxu0 %v24
    %194 = vmatprep.subr.mxu0 0.0
    %195 = vmatpush1.msra.mxu0 %v25
    %196 = vmatprep.subr.mxu0 0.0
    %197 = vmatpush1.msra.mxu0 %v26
    %198 = vmatprep.subr.mxu0 0.0
    %199 = vmatpush1.msra.mxu0 %v27
    %200 = vmatprep.subr.mxu0 0.0
    %201 = vmatpush1.msra.mxu0 %v28
    %202 = vmatprep.subr.mxu0 0.0
    %203 = vmatpush1.msra.mxu0 %v29
    %204 = vmatprep.subr.mxu0 0.0
    %205 = vmatpush1.msra.mxu0 %v30
    %206 = vmatprep.subr.mxu0 0.0
    %207 = vmatpush1.msra.mxu0 %v31
    %208 = vmatprep.subr.mxu0 0.0
    %209 = vmatpush1.msra.mxu0 0.0
    %210 = vmatprep.subr.mxu0 0.0
    %211 = vmatpush1.msra.mxu0 0.0
    %212 = vmatprep.subr.mxu0 0.0
    %213 = vmatpush1.msra.mxu0 0.0
    %214 = vmatprep.subr.mxu0 0.0
    %215 = vmatpush1.msra.mxu0 0.0
    %216 = vmatprep.subr.mxu0 0.0
    %217 = vmatpush1.msra.mxu0 0.0
    %218 = vmatprep.subr.mxu0 0.0
    %219 = vmatpush1.msra.mxu0 0.0
    %220 = vmatprep.subr.mxu0 0.0
    %221 = vmatpush1.msra.mxu0 0.0
    %222 = vmatprep.subr.mxu0 0.0
    %223 = vmatpush1.msra.mxu0 0.0
    %224 = vmatprep.subr.mxu0 0.0
    %225 = vmatpush1.msra.mxu0 0.0
    %226 = vmatprep.subr.mxu0 0.0
    %227 = vmatpush1.msra.mxu0 0.0
    %228 = vmatprep.subr.mxu0 0.0
    %229 = vmatpush1.msra.mxu0 0.0
    %230 = vmatprep.subr.mxu0 0.0
    %231 = vmatpush1.msra.mxu0 0.0
    %232 = vmatprep.subr.mxu0 0.0
    %233 = vmatpush1.msra.mxu0 0.0
    %234 = vmatprep.subr.mxu0 0.0
    %235 = vmatpush1.msra.mxu0 0.0
    %236 = vmatprep.subr.mxu0 0.0
    %237 = vmatpush1.msra.mxu0 0.0
    %238 = vmatprep.subr.mxu0 0.0
    %239 = vmatpush1.msra.mxu0 0.0
    %240 = vmatprep.subr.mxu0 0.0
    %241 = vmatpush1.msra.mxu0 0.0
    %242 = vmatprep.subr.mxu0 0.0
    %243 = vmatpush1.msra.mxu0 0.0
    %244 = vmatprep.subr.mxu0 0.0
    %245 = vmatpush1.msra.mxu0 0.0
    %246 = vmatprep.subr.mxu0 0.0
    %247 = vmatpush1.msra.mxu0 0.0
    %248 = vmatprep.subr.mxu0 0.0
    %249 = vmatpush1.msra.mxu0 0.0
    %250 = vmatprep.subr.mxu0 0.0
    %251 = vmatpush1.msra.mxu0 0.0
    %252 = vmatprep.subr.mxu0 0.0
    %253 = vmatpush1.msra.mxu0 0.0
    %254 = vmatprep.subr.mxu0 0.0
    %255 = vmatpush1.msra.mxu0 0.0
    %256 = vmatprep.mubr.f32.mxu0 0.0
    %257 = vmatmul.mubr.f32.gmra.mrb[0].mxu0 %v190
    %v258 = vpop.f32.mrb[0].mxu0
    %v259 = vadd.f32 %v188, %v258
    %v260 = vpop.f32.mrb[0].mxu0
    %261 = vdwg.mxu0
    %vm262 = vcmask 64512
    %263 = vst.msk [vmem:[#allocation3] sm:$0xff] %vm262, %v259
    %s264 = scalar_lea.vmem %s0, 4
    %v265 = vld [vmem:[%s264] sm:$0x7]
    %v266 = vlaneseq
    %v267 = vshrl.u32 %v266, 7
    %v268 = vsub.s32 0, %v267
    %v269 = vrot.slane %v265, %v268
    %v270 = vmul.f32 %v37, %v269
    %v271 = vlaneseq
    %v272 = vshrl.u32 %v271, 7
    %v273 = vsub.s32 1, %v272
    %v274 = vrot.slane %v265, %v273
    %v275 = vmul.f32 %v46, %v274
    %v276 = vadd.f32 %v270, %v275
    %v277 = vlaneseq
    %v278 = vshrl.u32 %v277, 7
    %v279 = vsub.s32 2, %v278
    %v280 = vrot.slane %v265, %v279
    %v281 = vmul.f32 %v56, %v280
    %v282 = vadd.f32 %v276, %v281
    %v283 = vsel %vm64, %v282, -inf
    %284 = vmax.xlane.f32.xlu0 %v283
    %v285 = vpop.xlane.xlu0 %284
    %v286 = vsub.f32 %v282, %v285
    %v287 = vmul.f32 %v286, 1.442695
    %v288 = vpow.pop %v287
    %v289 = vsel %vm64, %v288, 0.0
    %290 = vadd.xlane.f32.xlu0 %v289
    %v291 = vpop.xlane.xlu0 %290
    %v292 = vrcp.pop %v291
    %v293 = vmul.f32 %v288, %v292
    %v295 = vsel %vm64, %v293, 0
    %v298 = vsel %vm64, %v265, 0
    %300 = vmatprep.subr.mxu0 0.0
    %301 = vmatpush1.xpose.msra.mxu0 %v298
    %302 = vmatprep.subr.mxu0 0.0
    %303 = vmatpush1.xpose.msra.mxu0 0.0
    %304 = vmatprep.subr.mxu0 0.0
    %305 = vmatpush1.xpose.msra.mxu0 0.0
    %306 = vmatprep.subr.mxu0 0.0
    %307 = vmatpush1.xpose.msra.mxu0 0.0
    %308 = vmatprep.subr.mxu0 0.0
    %309 = vmatpush1.xpose.msra.mxu0 0.0
    %310 = vmatprep.subr.mxu0 0.0
    %311 = vmatpush1.xpose.msra.mxu0 0.0
    %312 = vmatprep.subr.mxu0 0.0
    %313 = vmatpush1.xpose.msra.mxu0 0.0
    %314 = vmatprep.subr.mxu0 0.0
    %315 = vmatpush1.xpose.msra.mxu0 0.0
    %316 = vmatprep.subr.mxu0 0.0
    %317 = vmatpush1.xpose.msra.mxu0 0.0
    %318 = vmatprep.subr.mxu0 0.0
    %319 = vmatpush1.xpose.msra.mxu0 0.0
    %320 = vmatprep.subr.mxu0 0.0
    %321 = vmatpush1.xpose.msra.mxu0 0.0
    %322 = vmatprep.subr.mxu0 0.0
    %323 = vmatpush1.xpose.msra.mxu0 0.0
    %324 = vmatprep.subr.mxu0 0.0
    %325 = vmatpush1.xpose.msra.mxu0 0.0
    %326 = vmatprep.subr.mxu0 0.0
    %327 = vmatpush1.xpose.msra.mxu0 0.0
    %328 = vmatprep.subr.mxu0 0.0
    %329 = vmatpush1.xpose.msra.mxu0 0.0
    %330 = vmatprep.subr.mxu0 0.0
    %331 = vmatpush1.xpose.msra.mxu0 0.0
    %332 = vmatprep.subr.mxu0 0.0
    %333 = vmatpush1.xpose.msra.mxu0 0.0
    %334 = vmatprep.subr.mxu0 0.0
    %335 = vmatpush1.xpose.msra.mxu0 0.0
    %336 = vmatprep.subr.mxu0 0.0
    %337 = vmatpush1.xpose.msra.mxu0 0.0
    %338 = vmatprep.subr.mxu0 0.0
    %339 = vmatpush1.xpose.msra.mxu0 0.0
    %340 = vmatprep.subr.mxu0 0.0
    %341 = vmatpush1.xpose.msra.mxu0 0.0
    %342 = vmatprep.subr.mxu0 0.0
    %343 = vmatpush1.xpose.msra.mxu0 0.0
    %344 = vmatprep.subr.mxu0 0.0
    %345 = vmatpush1.xpose.msra.mxu0 0.0
    %346 = vmatprep.subr.mxu0 0.0
    %347 = vmatpush1.xpose.msra.mxu0 0.0
    %348 = vmatprep.subr.mxu0 0.0
    %349 = vmatpush1.xpose.msra.mxu0 0.0
    %350 = vmatprep.subr.mxu0 0.0
    %351 = vmatpush1.xpose.msra.mxu0 0.0
    %352 = vmatprep.subr.mxu0 0.0
    %353 = vmatpush1.xpose.msra.mxu0 0.0
    %354 = vmatprep.subr.mxu0 0.0
    %355 = vmatpush1.xpose.msra.mxu0 0.0
    %356 = vmatprep.subr.mxu0 0.0
    %357 = vmatpush1.xpose.msra.mxu0 0.0
    %358 = vmatprep.subr.mxu0 0.0
    %359 = vmatpush1.xpose.msra.mxu0 0.0
    %360 = vmatprep.subr.mxu0 0.0
    %361 = vmatpush1.xpose.msra.mxu0 0.0
    %362 = vmatprep.subr.mxu0 0.0
    %363 = vmatpush1.xpose.msra.mxu0 0.0
    %364 = vmatprep.mubr.f32.mxu0 0.0
    %365 = vmatmul.mubr.f32.gmra.mrb[0].mxu0 %v295
    %v366 = vpop.f32.mrb[0].mxu0
    %v367 = vadd.f32 0.0, %v366
    %v368 = vpop.f32.mrb[0].mxu0
    %369 = vdwg.mxu0
    %371 = vset.pattern.permute.xlu0 0
    %372 = vperm.xlu0 %371, %v367
    %v373 = vpop.permute.xlu0 %372
    %v375 = vmul.f32 %v373, %v160
    %376 = vset.pattern.permute.xlu0 1
    %377 = vperm.xlu0 %376, %v367
    %v378 = vpop.permute.xlu0 %377
    %v380 = vmul.f32 %v378, %v169
    %v381 = vadd.f32 %v375, %v380
    %382 = vset.pattern.permute.xlu0 2
    %383 = vperm.xlu0 %382, %v367
    %v384 = vpop.permute.xlu0 %383
    %v386 = vmul.f32 %v384, %v179
    %v387 = vadd.f32 %v381, %v386
    %v388 = vmul.f32 %v387, %v387
    %v389 = vsel %vm64, %v388, 0.0
    %390 = vadd.xlane.f32.xlu0 %v389
    %v391 = vpop.xlane.xlu0 %390
    %v392 = vrsqrt.pop %v391
    %v393 = vmul.f32 %v387, %v392
    %v395 = vsel %vm64, %v393, 0
    %397 = vmatprep.subr.mxu0 0.0
    %398 = vmatpush1.msra.mxu0 %v24
    %399 = vmatprep.subr.mxu0 0.0
    %400 = vmatpush1.msra.mxu0 %v25
    %401 = vmatprep.subr.mxu0 0.0
    %402 = vmatpush1.msra.mxu0 %v26
    %403 = vmatprep.subr.mxu0 0.0
    %404 = vmatpush1.msra.mxu0 %v27
    %405 = vmatprep.subr.mxu0 0.0
    %406 = vmatpush1.msra.mxu0 %v28
    %407 = vmatprep.subr.mxu0 0.0
    %408 = vmatpush1.msra.mxu0 %v29
    %409 = vmatprep.subr.mxu0 0.0
    %410 = vmatpush1.msra.mxu0 %v30
    %411 = vmatprep.subr.mxu0 0.0
    %412 = vmatpush1.msra.mxu0 %v31
    %413 = vmatprep.subr.mxu0 0.0
    %414 = vmatpush1.msra.mxu0 0.0
    %415 = vmatprep.subr.mxu0 0.0
    %416 = vmatpush1.msra.mxu0 0.0
    %417 = vmatprep.subr.mxu0 0.0
    %418 = vmatpush1.msra.mxu0 0.0
    %419 = vmatprep.subr.mxu0 0.0
    %420 = vmatpush1.msra.mxu0 0.0
    %421 = vmatprep.subr.mxu0 0.0
    %422 = vmatpush1.msra.mxu0 0.0
    %423 = vmatprep.subr.mxu0 0.0
    %424 = vmatpush1.msra.mxu0 0.0
    %425 = vmatprep.subr.mxu0 0.0
    %426 = vmatpush1.msra.mxu0 0.0
    %427 = vmatprep.subr.mxu0 0.0
    %428 = vmatpush1.msra.mxu0 0.0
    %429 = vmatprep.subr.mxu0 0.0
    %430 = vmatpush1.msra.mxu0 0.0
    %431 = vmatprep.subr.mxu0 0.0
    %432 = vmatpush1.msra.mxu0 0.0
    %433 = vmatprep.subr.mxu0 0.0
    %434 = vmatpush1.msra.mxu0 0.0
    %435 = vmatprep.subr.mxu0 0.0
    %436 = vmatpush1.msra.mxu0 0.0
    %437 = vmatprep.subr.mxu0 0.0
    %438 = vmatpush1.msra.mxu0 0.0
    %439 = vmatprep.subr.mxu0 0.0
    %440 = vmatpush1.msra.mxu0 0.0
    %441 = vmatprep.subr.mxu0 0.0
    %442 = vmatpush1.msra.mxu0 0.0
    %443 = vmatprep.subr.mxu0 0.0
    %444 = vmatpush1.msra.mxu0 0.0
    %445 = vmatprep.subr.mxu0 0.0
    %446 = vmatpush1.msra.mxu0 0.0
    %447 = vmatprep.subr.mxu0 0.0
    %448 = vmatpush1.msra.mxu0 0.0
    %449 = vmatprep.subr.mxu0 0.0
    %450 = vmatpush1.msra.mxu0 0.0
    %451 = vmatprep.subr.mxu0 0.0
    %452 = vmatpush1.msra.mxu0 0.0
    %453 = vmatprep.subr.mxu0 0.0
    %454 = vmatpush1.msra.mxu0 0.0
    %455 = vmatprep.subr.mxu0 0.0
    %456 = vmatpush1.msra.mxu0 0.0
    %457 = vmatprep.subr.mxu0 0.0
    %458 = vmatpush1.msra.mxu0 0.0
    %459 = vmatprep.subr.mxu0 0.0
    %460 = vmatpush1.msra.mxu0 0.0
    %461 = vmatprep.mubr.f32.mxu0 0.0
    %462 = vmatmul.mubr.f32.gmra.mrb[0].mxu0 %v395
    %v463 = vpop.f32.mrb[0].mxu0
    %v464 = vadd.f32 %v188, %v463
    %v465 = vpop.f32.mrb[0].mxu0
    %466 = vdwg.mxu0
    %s467 = scalar_lea.vmem [#allocation3], 8
    %468 = vst.msk [vmem:[%s467] sm:$0xff] %vm262, %v464
    // Predicated region
    $region22: #{tpu_custom_call.1} parent=1 // pred_check
      _
    $region23: #{tpu_custom_call.1} parent=1 // pred_check_branch
      %470 = sbr.rel (0) target = $region25
    $region24: #{tpu_custom_call.1} parent=1 // pred_region
      %s472 = ssub.s32 256, 256
      %473 = vsyncadd [#allocation4], %s472
      %s474 = sshll.u32 [#allocation3], 4
      %s475 = int_to_ptr.vmem [resolvable:$true] %s474
      %480 = dma.vmem_to_hbm [thread:$0]  %s475, 256, %s5, [#allocation4], 128, 128, 8
    $region25: #{tpu_custom_call.1} parent=1 // pred_fallthru
      _
    // Predicated region
    $region26: #{tpu_custom_call.1} parent=1 // pred_check
      _
    $region27: #{tpu_custom_call.1} parent=1 // pred_check_branch
      %482 = sbr.rel (0) target = $region29
    $region28: #{tpu_custom_call.1} parent=1 // pred_region
      %483 = dma.done [#allocation4], 256
    $region29: #{tpu_custom_call.1} parent=1 // pred_fallthru
      _
    %484 = vsyncpa [#allocation4], 1

</llo_original>
